<compile_context>
chip_gen: v7x
topology: tpu7x:2x2x1
jax: 0.10.0
libtpu: 0.0.40
codegen_flags: <defaults>
</compile_context>

<pallas_src>
import functools

import jax
import jax.numpy as jnp
import numpy as np
from jax.experimental import pallas as pl
from jax.experimental.pallas import tpu as pltpu


def _refl_conv_gn_relu_kernel(xp_ref, w_ref, p_ref, o_ref, *, H, W, K, Cout, eps):
    """One batch sample per grid step; all vector work is 128-lane dense.

    xp_ref : (1, Hp, Wp*Cin)      reflection-padded input, (W, Cin) folded on lanes
    w_ref  : (K, Wp*Cin, W*Cout)  banded (block-Toeplitz) conv weights, one band per row tap
    p_ref  : (3, W*Cout)          [conv bias ; GN gamma ; GN beta], each pre-tiled W times
    o_ref  : (1, H, W*Cout)       packed HWC output slab
    """
    # ---- convolution: K deep matmuls (contraction = Wp*Cin, N = W*Cout) ----
    acc = jnp.dot(xp_ref[0, 0:H, :], w_ref[0],
                  preferred_element_type=jnp.float32)
    for dy in range(1, K):
        acc = acc + jnp.dot(xp_ref[0, dy:dy + H, :], w_ref[dy],
                            preferred_element_type=jnp.float32)
    # conv bias (must be added BEFORE the GroupNorm statistics)
    acc = acc + p_ref[0:1, :].astype(jnp.float32)

    # ---- GroupNorm(num_groups=1): stats over all of (C, H, W), single pass ----
    inv_n = 1.0 / float(H * W * Cout)
    s1 = jnp.sum(acc)
    s2 = jnp.sum(acc * acc)
    mean = s1 * inv_n
    var = s2 * inv_n - mean * mean
    out = (acc - mean) * jax.lax.rsqrt(var + eps)
    out = out * p_ref[1:2, :].astype(jnp.float32) + p_ref[2:3, :].astype(jnp.float32)

    # ---- ReLU ----
    out = jnp.maximum(out, 0.0)

    o_ref[...] = out.reshape(1, H, W * Cout).astype(o_ref.dtype)


def reflection_conv_block(x_nchw, weight_oihw, bias, gamma, beta,
                          *, kernel_size=3, eps=1e-5):
    """Forward pass equivalent to the PyTorch ReflectionConvBlock (groups=1).

    x_nchw      : (N, Cin, H, W)
    weight_oihw : (Cout, Cin, K, K)
    bias        : (Cout,)
    gamma, beta : (Cout,)
    returns     : (N, Cout, H, W)
    """
    N, Cin, H, W = x_nchw.shape
    Cout = weight_oihw.shape[0]
    K = kernel_size
    p = K // 2
    Hp, Wp = H + 2 * p, W + 2 * p
    WC = W * Cout          # packed output lane width (128 at the test shapes)
    WpC = Wp * Cin         # packed contraction width per row tap

    # --- boundary glue (single fused XLA copy): NCHW -> NHWC, reflect-pad, fold lanes ---
    x_nhwc = jnp.transpose(x_nchw, (0, 2, 3, 1))
    xp = jnp.pad(x_nhwc, ((0, 0), (p, p), (p, p), (0, 0)), mode="reflect")
    xp_flat = xp.reshape(N, Hp, WpC)

    # --- banded weights: out[h, w*Cout+co] = sum_dy xp_flat[h+dy, :] @ w_band[dy] ---
    # w_band[dy, jw*Cin+cin, w*Cout+co] = weight[co, cin, dy, jw-w] if 0 <= jw-w < K else 0
    w_hwio = jnp.transpose(weight_oihw, (2, 3, 1, 0))                 # (K, K, Cin, Cout)
    jw = jnp.arange(Wp)[:, None, None, None]                          # padded column
    cin = jnp.arange(Cin)[None, :, None, None]
    wcol = jnp.arange(W)[None, None, :, None]                         # output column
    co = jnp.arange(Cout)[None, None, None, :]
    dx = jw - wcol
    valid = (dx >= 0) & (dx < K)
    taps = w_hwio[:, jnp.clip(dx, 0, K - 1), cin, co]                 # (K, Wp, Cin, W, Cout)
    w_band = jnp.where(valid[None], taps, 0.0).astype(x_nchw.dtype)
    w_band = w_band.reshape(K, WpC, WC)

    # --- bias / gamma / beta: one operand, pre-tiled to the packed lane layout ---
    params = jnp.stack([jnp.tile(bias, W), jnp.tile(gamma, W), jnp.tile(beta, W)],
                       axis=0).astype(jnp.float32)                    # (3, W*Cout)

    kernel = functools.partial(_refl_conv_gn_relu_kernel,
                               H=H, W=W, K=K, Cout=Cout, eps=eps)

    out_packed = pl.pallas_call(
        kernel,
        out_shape=jax.ShapeDtypeStruct((N, H, WC), x_nchw.dtype),
        grid=(N,),
        in_specs=[
            pl.BlockSpec((1, Hp, WpC), lambda n: (n, 0, 0)),
            pl.BlockSpec((K, WpC, WC), lambda n: (0, 0, 0)),
            pl.BlockSpec((3, WC), lambda n: (0, 0)),
        ],
        out_specs=pl.BlockSpec((1, H, WC), lambda n: (n, 0, 0)),
        compiler_params=pltpu.CompilerParams(
            dimension_semantics=("parallel",)),
    )(xp_flat, w_band, params)

    # unpack (N, H, W*Cout) -> NCHW (single small XLA copy)
    out = out_packed.reshape(N, H, W, Cout)
    return jnp.transpose(out, (0, 3, 1, 2))


def _reference(x_nchw, weight_oihw, bias, gamma, beta, *, kernel_size=3, eps=1e-5):
    """Pure-JAX reference (reflection pad + conv + GroupNorm(1) + ReLU)."""
    p = kernel_size // 2
    xp = jnp.pad(x_nchw, ((0, 0), (0, 0), (p, p), (p, p)), mode="reflect")
    y = jax.lax.conv_general_dilated(
        xp, weight_oihw, window_strides=(1, 1), padding="VALID",
        dimension_numbers=("NCHW", "OIHW", "NCHW"))
    y = y + bias[None, :, None, None]
    mean = jnp.mean(y, axis=(1, 2, 3), keepdims=True)
    var = jnp.mean((y - mean) ** 2, axis=(1, 2, 3), keepdims=True)
    y = (y - mean) * jax.lax.rsqrt(var + eps)
    y = y * gamma[None, :, None, None] + beta[None, :, None, None]
    return jnp.maximum(y, 0.0)


if __name__ == "__main__":
    # Small shapes consistent with the module's forward pass (W*Cout = 128 lanes).
    N, Cin, Cout, H, W, K = 2, 4, 8, 16, 16, 3

    key = jax.random.PRNGKey(0)
    kx, kw, kb = jax.random.split(key, 3)

    x = jax.random.normal(kx, (N, Cin, H, W), dtype=jnp.float32)

    # Deterministic parameter init (synthetic; shapes match nn.Conv2d / nn.GroupNorm).
    fan_in = Cin * K * K
    bound = 1.0 / np.sqrt(fan_in)
    weight = jax.random.uniform(kw, (Cout, Cin, K, K), jnp.float32, -bound, bound)
    bias = jax.random.uniform(kb, (Cout,), jnp.float32, -bound, bound)
    gamma = jnp.ones((Cout,), jnp.float32)   # GroupNorm default affine init
    beta = jnp.zeros((Cout,), jnp.float32)

    out = reflection_conv_block(x, weight, bias, gamma, beta, kernel_size=K)
    out = jax.block_until_ready(out)

    ref = jax.block_until_ready(_reference(x, weight, bias, gamma, beta, kernel_size=K))
    np.testing.assert_allclose(np.asarray(out), np.asarray(ref), atol=1e-4, rtol=1e-4)

    print("KERNEL_OK")
</pallas_src>

<mosaic_0001>
module attributes {stable_mosaic.version = 11 : i64} {
  func.func @_refl_conv_gn_relu_kernel(%arg0: i32, %arg1: memref<1x18x72xf32, #tpu.memory_space<vmem>>, %arg2: memref<3x72x128xf32, #tpu.memory_space<vmem>>, %arg3: memref<3x128xf32, #tpu.memory_space<vmem>>, %arg4: memref<1x16x128xf32, #tpu.memory_space<vmem>>) attributes {dimension_semantics = [#tpu.dimension_semantics<parallel>], iteration_bounds = array<i64: 2>, scalar_prefetch = 0 : i64, scratch_operands = 0 : i64, tpu.core_type = #tpu.core_type<tc>, window_params = [{transform_indices = @transform_0, window_bounds = array<i64: 1, 18, 72>}, {pipeline_mode = #tpu.pipeline_mode<synchronous>, transform_indices = @transform_1, window_bounds = array<i64: 3, 72, 128>}, {pipeline_mode = #tpu.pipeline_mode<synchronous>, transform_indices = @transform_2, window_bounds = array<i64: 3, 128>}, {transform_indices = @transform_3, window_bounds = array<i64: 1, 16, 128>}]} {
    %c0 = arith.constant 0 : index
    %c0_0 = arith.constant 0 : index
    %c0_1 = arith.constant 0 : index
    %0 = vector.load %arg1[%c0, %c0_0, %c0_1] : memref<1x18x72xf32, #tpu.memory_space<vmem>>, vector<1x16x72xf32>
    %1 = vector.shape_cast %0 : vector<1x16x72xf32> to vector<16x72xf32>
    %c0_2 = arith.constant 0 : index
    %c0_3 = arith.constant 0 : index
    %c0_4 = arith.constant 0 : index
    %2 = vector.load %arg2[%c0_2, %c0_3, %c0_4] : memref<3x72x128xf32, #tpu.memory_space<vmem>>, vector<1x72x128xf32>
    %3 = vector.shape_cast %2 : vector<1x72x128xf32> to vector<72x128xf32>
    %cst = arith.constant dense<0.000000e+00> : vector<16x128xf32>
    %4 = tpu.matmul %1, %3, %cst {dimension_numbers = #tpu.dot_dimension_numbers<[1], [0], [0], [1], [0, 0, 1, 1], [], []>} : vector<16x72xf32>, vector<72x128xf32>, vector<16x128xf32> -> vector<16x128xf32>
    %c0_5 = arith.constant 0 : index
    %c1 = arith.constant 1 : index
    %c0_6 = arith.constant 0 : index
    %5 = vector.load %arg1[%c0_5, %c1, %c0_6] : memref<1x18x72xf32, #tpu.memory_space<vmem>>, vector<1x16x72xf32>
    %6 = vector.shape_cast %5 : vector<1x16x72xf32> to vector<16x72xf32>
    %c1_7 = arith.constant 1 : index
    %c0_8 = arith.constant 0 : index
    %c0_9 = arith.constant 0 : index
    %7 = vector.load %arg2[%c1_7, %c0_8, %c0_9] : memref<3x72x128xf32, #tpu.memory_space<vmem>>, vector<1x72x128xf32>
    %8 = vector.shape_cast %7 : vector<1x72x128xf32> to vector<72x128xf32>
    %cst_10 = arith.constant dense<0.000000e+00> : vector<16x128xf32>
    %9 = tpu.matmul %6, %8, %cst_10 {dimension_numbers = #tpu.dot_dimension_numbers<[1], [0], [0], [1], [0, 0, 1, 1], [], []>} : vector<16x72xf32>, vector<72x128xf32>, vector<16x128xf32> -> vector<16x128xf32>
    %10 = arith.addf %4, %9 : vector<16x128xf32>
    %c0_11 = arith.constant 0 : index
    %c2 = arith.constant 2 : index
    %c0_12 = arith.constant 0 : index
    %11 = vector.load %arg1[%c0_11, %c2, %c0_12] : memref<1x18x72xf32, #tpu.memory_space<vmem>>, vector<1x16x72xf32>
    %12 = vector.shape_cast %11 : vector<1x16x72xf32> to vector<16x72xf32>
    %c2_13 = arith.constant 2 : index
    %c0_14 = arith.constant 0 : index
    %c0_15 = arith.constant 0 : index
    %13 = vector.load %arg2[%c2_13, %c0_14, %c0_15] : memref<3x72x128xf32, #tpu.memory_space<vmem>>, vector<1x72x128xf32>
    %14 = vector.shape_cast %13 : vector<1x72x128xf32> to vector<72x128xf32>
    %cst_16 = arith.constant dense<0.000000e+00> : vector<16x128xf32>
    %15 = tpu.matmul %12, %14, %cst_16 {dimension_numbers = #tpu.dot_dimension_numbers<[1], [0], [0], [1], [0, 0, 1, 1], [], []>} : vector<16x72xf32>, vector<72x128xf32>, vector<16x128xf32> -> vector<16x128xf32>
    %16 = arith.addf %10, %15 : vector<16x128xf32>
    %c0_17 = arith.constant 0 : index
    %c0_18 = arith.constant 0 : index
    %17 = vector.load %arg3[%c0_17, %c0_18] : memref<3x128xf32, #tpu.memory_space<vmem>>, vector<1x128xf32>
    %18 = vector.broadcast %17 : vector<1x128xf32> to vector<16x128xf32>
    %19 = arith.addf %16, %18 : vector<16x128xf32>
    %20 = vector.shape_cast %19 : vector<16x128xf32> to vector<1x16x128xf32>
    %cst_19 = arith.constant dense<0.000000e+00> : vector<1xf32>
    %21 = vector.multi_reduction <add>, %20, %cst_19 [1, 2] : vector<1x16x128xf32> to vector<1xf32>
    %22 = vector.shape_cast %21 : vector<1xf32> to vector<1x1x1xf32>
    %23 = vector.extract %22[0, 0, 0] : f32 from vector<1x1x1xf32>
    %24 = arith.mulf %19, %19 : vector<16x128xf32>
    %25 = vector.shape_cast %24 : vector<16x128xf32> to vector<1x16x128xf32>
    %cst_20 = arith.constant dense<0.000000e+00> : vector<1xf32>
    %26 = vector.multi_reduction <add>, %25, %cst_20 [1, 2] : vector<1x16x128xf32> to vector<1xf32>
    %27 = vector.shape_cast %26 : vector<1xf32> to vector<1x1x1xf32>
    %28 = vector.extract %27[0, 0, 0] : f32 from vector<1x1x1xf32>
    %cst_21 = arith.constant 4.8828125E-4 : f32
    %29 = arith.mulf %23, %cst_21 : f32
    %cst_22 = arith.constant 4.8828125E-4 : f32
    %30 = arith.mulf %28, %cst_22 : f32
    %31 = arith.mulf %29, %29 : f32
    %32 = arith.subf %30, %31 : f32
    %33 = vector.broadcast %29 : f32 to vector<16x128xf32>
    %34 = arith.subf %19, %33 : vector<16x128xf32>
    %cst_23 = arith.constant 9.99999974E-6 : f32
    %35 = arith.addf %32, %cst_23 : f32
    %36 = math.rsqrt %35 : f32
    %37 = vector.broadcast %36 : f32 to vector<16x128xf32>
    %38 = arith.mulf %34, %37 : vector<16x128xf32>
    %c1_24 = arith.constant 1 : index
    %c0_25 = arith.constant 0 : index
    %39 = vector.load %arg3[%c1_24, %c0_25] : memref<3x128xf32, #tpu.memory_space<vmem>>, vector<1x128xf32>
    %40 = vector.broadcast %39 : vector<1x128xf32> to vector<16x128xf32>
    %41 = arith.mulf %38, %40 : vector<16x128xf32>
    %c2_26 = arith.constant 2 : index
    %c0_27 = arith.constant 0 : index
    %42 = vector.load %arg3[%c2_26, %c0_27] : memref<3x128xf32, #tpu.memory_space<vmem>>, vector<1x128xf32>
    %43 = vector.broadcast %42 : vector<1x128xf32> to vector<16x128xf32>
    %44 = arith.addf %41, %43 : vector<16x128xf32>
    %cst_28 = arith.constant 0.000000e+00 : f32
    %45 = vector.broadcast %cst_28 : f32 to vector<16x128xf32>
    %46 = arith.maximumf %44, %45 : vector<16x128xf32>
    %47 = vector.shape_cast %46 : vector<16x128xf32> to vector<1x16x128xf32>
    %c0_29 = arith.constant 0 : index
    %c0_30 = arith.constant 0 : index
    %c0_31 = arith.constant 0 : index
    %48 = vector.load %arg4[%c0_29, %c0_30, %c0_31] : memref<1x16x128xf32, #tpu.memory_space<vmem>>, vector<1x16x128xf32>
    tpu.vector_store %arg4[%c0_29, %c0_30, %c0_31], %47 {strides = array<i32>} : memref<1x16x128xf32, #tpu.memory_space<vmem>>, vector<1x16x128xf32>,
    return
  }
  func.func @transform_0(%arg0: i32) -> (i32, i32, i32) {
    %c0_i32 = arith.constant 0 : i32
    %c0_i32_0 = arith.constant 0 : i32
    %c0_i32_1 = arith.constant 0 : i32
    return %arg0, %c0_i32, %c0_i32_0 : i32, i32, i32
  }
  func.func @transform_1(%arg0: i32) -> (i32, i32, i32) {
    %c0_i32 = arith.constant 0 : i32
    %c0_i32_0 = arith.constant 0 : i32
    %c0_i32_1 = arith.constant 0 : i32
    %c0_i32_2 = arith.constant 0 : i32
    return %c0_i32, %c0_i32_0, %c0_i32_1 : i32, i32, i32
  }
  func.func @transform_2(%arg0: i32) -> (i32, i32) {
    %c0_i32 = arith.constant 0 : i32
    %c0_i32_0 = arith.constant 0 : i32
    %c0_i32_1 = arith.constant 0 : i32
    return %c0_i32, %c0_i32_0 : i32, i32
  }
  func.func @transform_3(%arg0: i32) -> (i32, i32, i32) {
    %c0_i32 = arith.constant 0 : i32
    %c0_i32_0 = arith.constant 0 : i32
    %c0_i32_1 = arith.constant 0 : i32
    return %arg0, %c0_i32, %c0_i32_0 : i32, i32, i32
  }
}

</mosaic_0001>

<llo_original>
// kernel: tpu_custom_call.1
$region0: #{tpu_custom_call.1}
  #allocation0 [shape = 'u32[]', space=smem, size = 0x4, offset = 0x4, fixed_abs, tag = 'smem constant byte address 0x4 - core index']
  #allocation1 [shape = 'u32[144,128]{1,0:T(1,128)}', space=vmem, size = 0x12000, scoped, tag = 'internal scratch']
  %s0 = inlined_call_operand.vmem [shape: f32[2,18,72], index: 0, kind: input, shape index: {}]
  %s1 = inlined_call_operand.hbm [shape: f32[3,72,128], index: 1, kind: input, shape index: {}]
  %s2 = inlined_call_operand.vmem [shape: f32[3,128], index: 2, kind: input, shape index: {}]
  %s3 = inlined_call_operand.hbm [shape: f32[2,16,128], index: 3, kind: output, shape index: {}]
  %s4 = sld [smem:[#allocation0]]
  $region49: #{tpu_custom_call.1} parent=0
    _
  %s6 = ssub.s32 1, %s4
  %s7 = scalar_select 0, %s6, %s4
  $region1: #{tpu_custom_call.1} parent=0
    #allocation2 [shape = 'u8[110592]{0}', space=vmem, size = 0x1b000, scoped, tag = 'input window, operand 1, single buffered']
    #allocation3 [shape = 's32[2]{0}', space=sflag, size = 0x8, scoped, tag = 'scoped memory for tpu_custom_call.1']
    #allocation4 [shape = 's32[2]{0}', space=sflag, size = 0x8, scoped, tag = 'scoped memory for tpu_custom_call.1']
    #allocation5 [shape = 'u8[16384]{0}', space=vmem, size = 0x4000, scoped, tag = 'output window, operand 0']
    %8 = vsyncpa [#allocation3], 0
    %9 = vsyncpa [#allocation4], 0
    %s10 = scalar_lea.sflag [#allocation4], 1
    %11 = vsyncpa %s10, 0
    loop: start=0, step=1, limit=4
    $region2: #{tpu_custom_call.1} parent=1 // loop_pre_header
      _
    $region3: #{tpu_custom_call.1} parent=1 // loop_header
      %s13 = sphi 0, %s17
      %p14 = scmp.ge.s32.totalorder %s13, 4
      %s23 = sphi 0, %s25
      %s26 = sphi 0, %s23
      %s27 = sphi 0, %s26
      %s43 = sphi 0, %s27
      %s47 = sphi 0, %s47
      %s49 = sphi 0, %s47
      %s50 = sphi 0, %s49
      %s64 = sphi 0, %s50
      %s68 = sphi 0, %s68
      %s70 = sphi 0, %s68
      %s71 = sphi 0, %s70
      %s85 = sphi 0, %s71
      %s91 = sphi 0, %s93
      %s94 = sphi 0, %s91
      %s95 = sphi 0, %s94
      %s111 = sphi 0, %s95
    $region4: #{tpu_custom_call.1} parent=1 // loop_header_branch
      %16 = sbr.rel (%p14) target = $region8
    $region5: #{tpu_custom_call.1} parent=1 // loop_body
      %s18 = ssub.s32 %s13, 1
      %s19 = ssub.s32 %s13, 2
      %s20 = sadd.s32 %s13, 1
      %s21 = ssub.s32 %s13, %s20
      %p22 = scmp.eq.s32.totalorder %s21, 0
      %s24 = sadd.s32 %s23, 1
      %s25 = scalar_select %p22, %s23, %s24
      %p28 = pneg %p22
      %p29 = scmp.eq.s32.totalorder %s13, 1
      %p30 = por %p28, %p29
      %p31 = scmp.ne.s32.totalorder %s23, %s26
      %p32 = scmp.eq.s32.totalorder %s13, 0
      %p33 = por %p31, %p32
      %p34 = scmp.ne.s32.totalorder %s23, %s26
      %p35 = scmp.eq.s32.totalorder %s18, 1
      %p36 = por %p34, %p35
      %p37 = scmp.ne.s32.totalorder %s26, %s27
      %p38 = scmp.eq.s32.totalorder %s18, 0
      %p39 = por %p37, %p38
      %p40 = scmp.ne.s32.totalorder %s26, %s27
      %p41 = scmp.eq.s32.totalorder %s19, 1
      %p42 = por %p40, %p41
      %p44 = scmp.ne.s32.totalorder %s27, %s43
      %p45 = scmp.eq.s32.totalorder %s19, 0
      %p46 = por %p44, %p45
      %s48 = sadd.s32 %s47, 1
      %p51 = scmp.eq.s32.totalorder %s13, 1
      %p52 = scmp.ne.s32.totalorder %s47, %s49
      %p53 = scmp.eq.s32.totalorder %s13, 0
      %p54 = por %p52, %p53
      %p55 = scmp.ne.s32.totalorder %s47, %s49
      %p56 = scmp.eq.s32.totalorder %s18, 1
      %p57 = por %p55, %p56
      %p58 = scmp.ne.s32.totalorder %s49, %s50
      %p59 = scmp.eq.s32.totalorder %s18, 0
      %p60 = por %p58, %p59
      %p61 = scmp.ne.s32.totalorder %s49, %s50
      %p62 = scmp.eq.s32.totalorder %s19, 1
      %p63 = por %p61, %p62
      %p65 = scmp.ne.s32.totalorder %s50, %s64
      %p66 = scmp.eq.s32.totalorder %s19, 0
      %p67 = por %p65, %p66
      %s69 = sadd.s32 %s68, 1
      %p72 = scmp.eq.s32.totalorder %s13, 1
      %p73 = scmp.ne.s32.totalorder %s68, %s70
      %p74 = scmp.eq.s32.totalorder %s13, 0
      %p75 = por %p73, %p74
      %p76 = scmp.ne.s32.totalorder %s68, %s70
      %p77 = scmp.eq.s32.totalorder %s18, 1
      %p78 = por %p76, %p77
      %p79 = scmp.ne.s32.totalorder %s70, %s71
      %p80 = scmp.eq.s32.totalorder %s18, 0
      %p81 = por %p79, %p80
      %p82 = scmp.ne.s32.totalorder %s70, %s71
      %p83 = scmp.eq.s32.totalorder %s19, 1
      %p84 = por %p82, %p83
      %p86 = scmp.ne.s32.totalorder %s71, %s85
      %p87 = scmp.eq.s32.totalorder %s19, 0
      %p88 = por %p86, %p87
      %s89 = ssub.s32 %s13, %s20
      %p90 = scmp.eq.s32.totalorder %s89, 0
      %s92 = sadd.s32 %s91, 1
      %s93 = scalar_select %p90, %s91, %s92
      %p96 = pneg %p90
      %p97 = scmp.eq.s32.totalorder %s13, 1
      %p98 = por %p96, %p97
      %p99 = scmp.ne.s32.totalorder %s91, %s94
      %p100 = scmp.eq.s32.totalorder %s13, 0
      %p101 = por %p99, %p100
      %p102 = scmp.ne.s32.totalorder %s91, %s94
      %p103 = scmp.eq.s32.totalorder %s18, 1
      %p104 = por %p102, %p103
      %p105 = scmp.ne.s32.totalorder %s94, %s95
      %p106 = scmp.eq.s32.totalorder %s18, 0
      %p107 = por %p105, %p106
      %p108 = scmp.ne.s32.totalorder %s94, %s95
      %p109 = scmp.eq.s32.totalorder %s19, 1
      %p110 = por %p108, %p109
      %p112 = scmp.ne.s32.totalorder %s95, %s111
      %p113 = scmp.eq.s32.totalorder %s19, 0
      %p114 = por %p112, %p113
      %p115 = scmp.le.s32.totalorder 1, %s13
      %p116 = scmp.lt.s32.totalorder %s13, 3
      %p117 = pnand %p115, %p116
      %p118 = pneg %p117
      // Predicated region
      $region9: #{tpu_custom_call.1} parent=5 // pred_check
        _
      $region10: #{tpu_custom_call.1} parent=5 // pred_check_branch
        %120 = sbr.rel (%p117) target = $region12
      $region11: #{tpu_custom_call.1} parent=5 // pred_region
        %s121 = ssub.s32 %s13, 1
        // Predicated region
        $region13: #{tpu_custom_call.1} parent=11 // pred_check
          %p122 = pneg %p60
        $region14: #{tpu_custom_call.1} parent=11 // pred_check_branch
          %124 = sbr.rel (%p122) target = $region16
        $region15: #{tpu_custom_call.1} parent=11 // pred_region
          %s126 = ssub.s32 3456, 3456
          %127 = vsyncadd [#allocation3], %s126
          %s128 = sshll.u32 [#allocation2], 4
          %s129 = int_to_ptr.vmem [resolvable:$true] %s128
          %134 = dma.hbm_to_vmem [thread:$0]  %s1, 3456, %s129, [#allocation3], 128, 128, 8
        $region16: #{tpu_custom_call.1} parent=11 // pred_fallthru
          _
        // Predicated region
        $region17: #{tpu_custom_call.1} parent=11 // pred_check
          %p135 = pneg %p81
        $region18: #{tpu_custom_call.1} parent=11 // pred_check_branch
          %137 = sbr.rel (%p135) target = $region20
        $region19: #{tpu_custom_call.1} parent=11 // pred_region
          _
        $region20: #{tpu_custom_call.1} parent=11 // pred_fallthru
          _
      $region12: #{tpu_custom_call.1} parent=5 // pred_fallthru
        _
      %p138 = scmp.lt.s32.totalorder %s13, 2
      // Predicated region
      $region21: #{tpu_custom_call.1} parent=5 // pred_check
        %p139 = pneg %p138
      $region22: #{tpu_custom_call.1} parent=5 // pred_check_branch
        %141 = sbr.rel (%p139) target = $region24
      $region23: #{tpu_custom_call.1} parent=5 // pred_region
        // Predicated region
        $region25: #{tpu_custom_call.1} parent=23 // pred_check
          %p142 = pneg %p33
        $region26: #{tpu_custom_call.1} parent=23 // pred_check_branch
          %144 = sbr.rel (%p142) target = $region28
        $region27: #{tpu_custom_call.1} parent=23 // pred_region
          %p145 = scmp.lt.s32.totalorder %s13, 1
          %s146 = scalar_select %p145, %s13, 1
          %s147 = smul.addr %s146, 3
          %s148 = smul.addr %s147, 8
          %s149 = scalar_lea.vmem %s0, %s148
        $region28: #{tpu_custom_call.1} parent=23 // pred_fallthru
          _
      $region24: #{tpu_custom_call.1} parent=5 // pred_fallthru
        _
      %p150 = scmp.le.s32.totalorder 1, %s13
      %p151 = scmp.lt.s32.totalorder %s13, 3
      %p152 = pnand %p150, %p151
      %p153 = pneg %p152
      // Predicated region
      $region29: #{tpu_custom_call.1} parent=5 // pred_check
        _
      $region30: #{tpu_custom_call.1} parent=5 // pred_check_branch
        %155 = sbr.rel (%p152) target = $region32
      $region31: #{tpu_custom_call.1} parent=5 // pred_region
        %s156 = ssub.s32 %s13, 1
        // Predicated region
        $region33: #{tpu_custom_call.1} parent=31 // pred_check
          %p157 = pneg %p60
        $region34: #{tpu_custom_call.1} parent=31 // pred_check_branch
          %159 = sbr.rel (%p157) target = $region36
        $region35: #{tpu_custom_call.1} parent=31 // pred_region
          %160 = dma.done [#allocation3], 3456
        $region36: #{tpu_custom_call.1} parent=31 // pred_fallthru
          _
        %p161 = scmp.lt.s32.totalorder %s18, 1
        %s162 = scalar_select %p161, %s18, 1
        %s163 = smul.addr %s162, 3
        %s164 = smul.addr %s163, 8
        %s165 = scalar_lea.vmem %s0, %s164
        %p166 = pneg %p39
        %p167 = pneg %p36
        %p168 = pneg %p60
        %p169 = pneg %p57
        %p170 = pneg %p81
        %p171 = pneg %p78
        %p172 = pneg %p107
        %p173 = pneg %p104
        %s174 = sand.u32 %s94, 1
        %s175 = scalar_lea.sflag [#allocation4], %s174
        %s176 = sand.u32 %s94, 1
        %s177 = smul.addr %s176, 16
        %s178 = scalar_lea.vmem [#allocation5], %s177
        %p179 = scmp.lt.s32.totalorder %s18, 1
        %s180 = scalar_select %p179, %s18, 1
        %s181 = smul.addr %s180, 3
        %s182 = smul.addr %s181, 8
        %s183 = scalar_lea.vmem %s0, %s182
        %v184 = vld [vmem:[%s183] sm:$0xff]
        %v185 = vld [vmem:[%s183 + $0x8] sm:$0xff]
        %v186 = vld [vmem:[#allocation2] sm:$0xff]
        %v187 = vld [vmem:[#allocation2 + $0x8] sm:$0xff]
        %v188 = vld [vmem:[#allocation2 + $0x10] sm:$0xff]
        %v189 = vld [vmem:[#allocation2 + $0x18] sm:$0xff]
        %v190 = vld [vmem:[#allocation2 + $0x20] sm:$0xff]
        %v191 = vld [vmem:[#allocation2 + $0x28] sm:$0xff]
        %v192 = vld [vmem:[#allocation2 + $0x30] sm:$0xff]
        %v193 = vld [vmem:[#allocation2 + $0x38] sm:$0xff]
        %v194 = vld [vmem:[#allocation2 + $0x40] sm:$0xff]
        %v195 = vld [vmem:[%s183 + $0x1] sm:$0xff]
        %v196 = vld [vmem:[%s183 + $0x9] sm:$0xff]
        %s197 = scalar_lea.vmem [#allocation2], 72
        %v198 = vld [vmem:[%s197] sm:$0xff]
        %v199 = vld [vmem:[%s197 + $0x8] sm:$0xff]
        %v200 = vld [vmem:[%s197 + $0x10] sm:$0xff]
        %v201 = vld [vmem:[%s197 + $0x18] sm:$0xff]
        %v202 = vld [vmem:[%s197 + $0x20] sm:$0xff]
        %v203 = vld [vmem:[%s197 + $0x28] sm:$0xff]
        %v204 = vld [vmem:[%s197 + $0x30] sm:$0xff]
        %v205 = vld [vmem:[%s197 + $0x38] sm:$0xff]
        %v206 = vld [vmem:[%s197 + $0x40] sm:$0xff]
        %vm207 = vcmask 588800
        %v209 = vsel %vm207, %v195, 0
        %v212 = vsel %vm207, %v196, 0
        %214 = vmatprep.subr.mxu0 0.0
        %215 = vmatpush1.msra.mxu0 %v198
        %216 = vmatprep.subr.mxu0 0.0
        %217 = vmatpush1.msra.mxu0 %v199
        %218 = vmatprep.subr.mxu0 0.0
        %219 = vmatpush1.msra.mxu0 %v200
        %220 = vmatprep.subr.mxu0 0.0
        %221 = vmatpush1.msra.mxu0 %v201
        %222 = vmatprep.subr.mxu0 0.0
        %223 = vmatpush1.msra.mxu0 %v202
        %224 = vmatprep.subr.mxu0 0.0
        %225 = vmatpush1.msra.mxu0 %v203
        %226 = vmatprep.subr.mxu0 0.0
        %227 = vmatpush1.msra.mxu0 %v204
        %228 = vmatprep.subr.mxu0 0.0
        %229 = vmatpush1.msra.mxu0 %v205
        %230 = vmatprep.subr.mxu0 0.0
        %231 = vmatpush1.msra.mxu0 %v206
        %232 = vmatprep.subr.mxu0 0.0
        %233 = vmatpush1.msra.mxu0 0.0
        %234 = vmatprep.subr.mxu0 0.0
        %235 = vmatpush1.msra.mxu0 0.0
        %236 = vmatprep.subr.mxu0 0.0
        %237 = vmatpush1.msra.mxu0 0.0
        %238 = vmatprep.subr.mxu0 0.0
        %239 = vmatpush1.msra.mxu0 0.0
        %240 = vmatprep.subr.mxu0 0.0
        %241 = vmatpush1.msra.mxu0 0.0
        %242 = vmatprep.subr.mxu0 0.0
        %243 = vmatpush1.msra.mxu0 0.0
        %244 = vmatprep.subr.mxu0 0.0
        %245 = vmatpush1.msra.mxu0 0.0
        %246 = vmatprep.subr.mxu0 0.0
        %247 = vmatpush1.msra.mxu0 0.0
        %248 = vmatprep.subr.mxu0 0.0
        %249 = vmatpush1.msra.mxu0 0.0
        %250 = vmatprep.subr.mxu0 0.0
        %251 = vmatpush1.msra.mxu0 0.0
        %252 = vmatprep.subr.mxu0 0.0
        %253 = vmatpush1.msra.mxu0 0.0
        %254 = vmatprep.subr.mxu0 0.0
        %255 = vmatpush1.msra.mxu0 0.0
        %256 = vmatprep.subr.mxu0 0.0
        %257 = vmatpush1.msra.mxu0 0.0
        %258 = vmatprep.subr.mxu0 0.0
        %259 = vmatpush1.msra.mxu0 0.0
        %260 = vmatprep.subr.mxu0 0.0
        %261 = vmatpush1.msra.mxu0 0.0
        %262 = vmatprep.subr.mxu0 0.0
        %263 = vmatpush1.msra.mxu0 0.0
        %264 = vmatprep.subr.mxu0 0.0
        %265 = vmatpush1.msra.mxu0 0.0
        %266 = vmatprep.subr.mxu0 0.0
        %267 = vmatpush1.msra.mxu0 0.0
        %268 = vmatprep.subr.mxu0 0.0
        %269 = vmatpush1.msra.mxu0 0.0
        %270 = vmatprep.subr.mxu0 0.0
        %271 = vmatpush1.msra.mxu0 0.0
        %272 = vmatprep.subr.mxu0 0.0
        %273 = vmatpush1.msra.mxu0 0.0
        %274 = vmatprep.subr.mxu0 0.0
        %275 = vmatpush1.msra.mxu0 0.0
        %276 = vmatprep.subr.mxu0 0.0
        %277 = vmatpush1.msra.mxu0 0.0
        %278 = vmatprep.mubr.f32.mxu0 0.0
        %279 = vmatmul.mubr.f32.gmra.mrb[0].mxu0 %v209
        %v280 = vpop.f32.mrb[0].mxu0
        %v281 = vadd.f32 0.0, %v280
        %v282 = vpop.f32.mrb[0].mxu0
        %283 = vmatprep.mubr.f32.mxu0 0.0
        %284 = vmatmul.mubr.f32.gmra.mrb[0].mxu0 %v212
        %v285 = vpop.f32.mrb[0].mxu0
        %v286 = vadd.f32 0.0, %v285
        %v287 = vpop.f32.mrb[0].mxu0
        %288 = vdwg.mxu0
        %v290 = vsel %vm207, %v184, 0
        %v293 = vsel %vm207, %v185, 0
        %295 = vmatprep.subr.mxu0 0.0
        %296 = vmatpush1.msra.mxu0 %v186
        %297 = vmatprep.subr.mxu0 0.0
        %298 = vmatpush1.msra.mxu0 %v187
        %299 = vmatprep.subr.mxu0 0.0
        %300 = vmatpush1.msra.mxu0 %v188
        %301 = vmatprep.subr.mxu0 0.0
        %302 = vmatpush1.msra.mxu0 %v189
        %303 = vmatprep.subr.mxu0 0.0
        %304 = vmatpush1.msra.mxu0 %v190
        %305 = vmatprep.subr.mxu0 0.0
        %306 = vmatpush1.msra.mxu0 %v191
        %307 = vmatprep.subr.mxu0 0.0
        %308 = vmatpush1.msra.mxu0 %v192
        %309 = vmatprep.subr.mxu0 0.0
        %310 = vmatpush1.msra.mxu0 %v193
        %311 = vmatprep.subr.mxu0 0.0
        %312 = vmatpush1.msra.mxu0 %v194
        %313 = vmatprep.subr.mxu0 0.0
        %314 = vmatpush1.msra.mxu0 0.0
        %315 = vmatprep.subr.mxu0 0.0
        %316 = vmatpush1.msra.mxu0 0.0
        %317 = vmatprep.subr.mxu0 0.0
        %318 = vmatpush1.msra.mxu0 0.0
        %319 = vmatprep.subr.mxu0 0.0
        %320 = vmatpush1.msra.mxu0 0.0
        %321 = vmatprep.subr.mxu0 0.0
        %322 = vmatpush1.msra.mxu0 0.0
        %323 = vmatprep.subr.mxu0 0.0
        %324 = vmatpush1.msra.mxu0 0.0
        %325 = vmatprep.subr.mxu0 0.0
        %326 = vmatpush1.msra.mxu0 0.0
        %327 = vmatprep.subr.mxu0 0.0
        %328 = vmatpush1.msra.mxu0 0.0
        %329 = vmatprep.subr.mxu0 0.0
        %330 = vmatpush1.msra.mxu0 0.0
        %331 = vmatprep.subr.mxu0 0.0
        %332 = vmatpush1.msra.mxu0 0.0
        %333 = vmatprep.subr.mxu0 0.0
        %334 = vmatpush1.msra.mxu0 0.0
        %335 = vmatprep.subr.mxu0 0.0
        %336 = vmatpush1.msra.mxu0 0.0
        %337 = vmatprep.subr.mxu0 0.0
        %338 = vmatpush1.msra.mxu0 0.0
        %339 = vmatprep.subr.mxu0 0.0
        %340 = vmatpush1.msra.mxu0 0.0
        %341 = vmatprep.subr.mxu0 0.0
        %342 = vmatpush1.msra.mxu0 0.0
        %343 = vmatprep.subr.mxu0 0.0
        %344 = vmatpush1.msra.mxu0 0.0
        %345 = vmatprep.subr.mxu0 0.0
        %346 = vmatpush1.msra.mxu0 0.0
        %347 = vmatprep.subr.mxu0 0.0
        %348 = vmatpush1.msra.mxu0 0.0
        %349 = vmatprep.subr.mxu0 0.0
        %350 = vmatpush1.msra.mxu0 0.0
        %351 = vmatprep.subr.mxu0 0.0
        %352 = vmatpush1.msra.mxu0 0.0
        %353 = vmatprep.subr.mxu0 0.0
        %354 = vmatpush1.msra.mxu0 0.0
        %355 = vmatprep.subr.mxu0 0.0
        %356 = vmatpush1.msra.mxu0 0.0
        %357 = vmatprep.subr.mxu0 0.0
        %358 = vmatpush1.msra.mxu0 0.0
        %359 = vmatprep.mubr.f32.mxu0 0.0
        %360 = vmatmul.mubr.f32.gmra.mrb[0].mxu0 %v290
        %v361 = vpop.f32.mrb[0].mxu0
        %v362 = vadd.f32 %v281, %v361
        %v363 = vpop.f32.mrb[0].mxu0
        %364 = vmatprep.mubr.f32.mxu0 0.0
        %365 = vmatmul.mubr.f32.gmra.mrb[0].mxu0 %v293
        %v366 = vpop.f32.mrb[0].mxu0
        %v367 = vadd.f32 %v286, %v366
        %v368 = vpop.f32.mrb[0].mxu0
        %369 = vdwg.mxu0
        %v370 = vld [vmem:[%s183 + $0x2] sm:$0xff]
        %v371 = vld [vmem:[%s183 + $0xa] sm:$0xff]
        %s372 = scalar_lea.vmem [#allocation2], 144
        %v373 = vld [vmem:[%s372] sm:$0xff]
        %v374 = vld [vmem:[%s372 + $0x8] sm:$0xff]
        %v375 = vld [vmem:[%s372 + $0x10] sm:$0xff]
        %v376 = vld [vmem:[%s372 + $0x18] sm:$0xff]
        %v377 = vld [vmem:[%s372 + $0x20] sm:$0xff]
        %v378 = vld [vmem:[%s372 + $0x28] sm:$0xff]
        %v379 = vld [vmem:[%s372 + $0x30] sm:$0xff]
        %v380 = vld [vmem:[%s372 + $0x38] sm:$0xff]
        %v381 = vld [vmem:[%s372 + $0x40] sm:$0xff]
        %v383 = vsel %vm207, %v370, 0
        %v386 = vsel %vm207, %v371, 0
        %388 = vmatprep.subr.mxu0 0.0
        %389 = vmatpush1.msra.mxu0 %v373
        %390 = vmatprep.subr.mxu0 0.0
        %391 = vmatpush1.msra.mxu0 %v374
        %392 = vmatprep.subr.mxu0 0.0
        %393 = vmatpush1.msra.mxu0 %v375
        %394 = vmatprep.subr.mxu0 0.0
        %395 = vmatpush1.msra.mxu0 %v376
        %396 = vmatprep.subr.mxu0 0.0
        %397 = vmatpush1.msra.mxu0 %v377
        %398 = vmatprep.subr.mxu0 0.0
        %399 = vmatpush1.msra.mxu0 %v378
        %400 = vmatprep.subr.mxu0 0.0
        %401 = vmatpush1.msra.mxu0 %v379
        %402 = vmatprep.subr.mxu0 0.0
        %403 = vmatpush1.msra.mxu0 %v380
        %404 = vmatprep.subr.mxu0 0.0
        %405 = vmatpush1.msra.mxu0 %v381
        %406 = vmatprep.subr.mxu0 0.0
        %407 = vmatpush1.msra.mxu0 0.0
        %408 = vmatprep.subr.mxu0 0.0
        %409 = vmatpush1.msra.mxu0 0.0
        %410 = vmatprep.subr.mxu0 0.0
        %411 = vmatpush1.msra.mxu0 0.0
        %412 = vmatprep.subr.mxu0 0.0
        %413 = vmatpush1.msra.mxu0 0.0
        %414 = vmatprep.subr.mxu0 0.0
        %415 = vmatpush1.msra.mxu0 0.0
        %416 = vmatprep.subr.mxu0 0.0
        %417 = vmatpush1.msra.mxu0 0.0
        %418 = vmatprep.subr.mxu0 0.0
        %419 = vmatpush1.msra.mxu0 0.0
        %420 = vmatprep.subr.mxu0 0.0
        %421 = vmatpush1.msra.mxu0 0.0
        %422 = vmatprep.subr.mxu0 0.0
        %423 = vmatpush1.msra.mxu0 0.0
        %424 = vmatprep.subr.mxu0 0.0
        %425 = vmatpush1.msra.mxu0 0.0
        %426 = vmatprep.subr.mxu0 0.0
        %427 = vmatpush1.msra.mxu0 0.0
        %428 = vmatprep.subr.mxu0 0.0
        %429 = vmatpush1.msra.mxu0 0.0
        %430 = vmatprep.subr.mxu0 0.0
        %431 = vmatpush1.msra.mxu0 0.0
        %432 = vmatprep.subr.mxu0 0.0
        %433 = vmatpush1.msra.mxu0 0.0
        %434 = vmatprep.subr.mxu0 0.0
        %435 = vmatpush1.msra.mxu0 0.0
        %436 = vmatprep.subr.mxu0 0.0
        %437 = vmatpush1.msra.mxu0 0.0
        %438 = vmatprep.subr.mxu0 0.0
        %439 = vmatpush1.msra.mxu0 0.0
        %440 = vmatprep.subr.mxu0 0.0
        %441 = vmatpush1.msra.mxu0 0.0
        %442 = vmatprep.subr.mxu0 0.0
        %443 = vmatpush1.msra.mxu0 0.0
        %444 = vmatprep.subr.mxu0 0.0
        %445 = vmatpush1.msra.mxu0 0.0
        %446 = vmatprep.subr.mxu0 0.0
        %447 = vmatpush1.msra.mxu0 0.0
        %448 = vmatprep.subr.mxu0 0.0
        %449 = vmatpush1.msra.mxu0 0.0
        %450 = vmatprep.subr.mxu0 0.0
        %451 = vmatpush1.msra.mxu0 0.0
        %452 = vmatprep.mubr.f32.mxu0 0.0
        %453 = vmatmul.mubr.f32.gmra.mrb[0].mxu0 %v383
        %v454 = vpop.f32.mrb[0].mxu0
        %v455 = vadd.f32 0.0, %v454
        %v456 = vpop.f32.mrb[0].mxu0
        %457 = vmatprep.mubr.f32.mxu0 0.0
        %458 = vmatmul.mubr.f32.gmra.mrb[0].mxu0 %v386
        %v459 = vpop.f32.mrb[0].mxu0
        %v460 = vadd.f32 0.0, %v459
        %v461 = vpop.f32.mrb[0].mxu0
        %462 = vdwg.mxu0
        %v463 = vadd.f32 %v362, %v455
        %v464 = vadd.f32 %v367, %v460
        %v465 = vld [vmem:[%s2] sm:$0x1]
        %v466 = vlaneseq
        %v467 = vshrl.u32 %v466, 7
        %v468 = vsub.s32 0, %v467
        %v469 = vrot.slane %v465, %v468
        %v470 = vadd.f32 %v463, %v469
        %v471 = vadd.f32 %v464, %v469
        %v472 = vadd.f32 %v470, %v471
        %473 = vadd.xlane.f32.xlu0 %v472
        %v474 = vpop.xlane.xlu0 %473
        %v475 = vrot.slane %v474, 4
        %v476 = vadd.f32 %v474, %v475
        %v477 = vrot.slane %v476, 2
        %v478 = vadd.f32 %v476, %v477
        %v479 = vrot.slane %v478, 1
        %v480 = vadd.f32 %v478, %v479
        %s481 = vtos %v480
        %v482 = vmul.f32 %v470, %v470
        %v483 = vmul.f32 %v471, %v471
        %v484 = vadd.f32 %v482, %v483
        %485 = vadd.xlane.f32.xlu0 %v484
        %v486 = vpop.xlane.xlu0 %485
        %v487 = vrot.slane %v486, 4
        %v488 = vadd.f32 %v486, %v487
        %v489 = vrot.slane %v488, 2
        %v490 = vadd.f32 %v488, %v489
        %v491 = vrot.slane %v490, 1
        %v492 = vadd.f32 %v490, %v491
        %s493 = vtos %v492
        %s494 = smul.f32 %s481, 0.00048828125
        %s495 = smul.f32 %s493, 0.00048828125
        %s496 = smul.f32 %s494, %s494
        %s497 = ssub.f32 %s495, %s496
        %v498 = vstv %s494
        %v499 = vsub.f32 %v470, %v498
        %v500 = vsub.f32 %v471, %v498
        %s501 = sadd.f32 %s497, 1e-05
        %v502 = vstv %s501
        %v503 = vrsqrt.pop %v502
        %s504 = vtos %v503
        %v505 = vstv %s504
        %v506 = vmul.f32 %v499, %v505
        %v507 = vmul.f32 %v500, %v505
        %v508 = vld [vmem:[%s2 + $0x1] sm:$0x1]
        %v509 = vlaneseq
        %v510 = vshrl.u32 %v509, 7
        %v511 = vsub.s32 0, %v510
        %v512 = vrot.slane %v508, %v511
        %v513 = vmul.f32 %v506, %v512
        %v514 = vmul.f32 %v507, %v512
        %v515 = vld [vmem:[%s2 + $0x2] sm:$0x1]
        %v516 = vlaneseq
        %v517 = vshrl.u32 %v516, 7
        %v518 = vsub.s32 0, %v517
        %v519 = vrot.slane %v515, %v518
        %v520 = vadd.f32 %v513, %v519
        %v521 = vadd.f32 %v514, %v519
        %v522 = vmax.f32 %v520, 0.0
        %v523 = vmax.f32 %v521, 0.0
        %524 = vst [vmem:[%s178] sm:$0xff] %v522
        %525 = vst [vmem:[%s178 + $0x8] sm:$0xff] %v523
        %s526 = sand.u32 %s94, 1
        %s527 = scalar_lea.sflag [#allocation4], %s526
        %s528 = sand.u32 %s94, 1
        %s529 = smul.addr %s528, 16
        %s530 = scalar_lea.vmem [#allocation5], %s529
        // Predicated region
        $region37: #{tpu_custom_call.1} parent=31 // pred_check
          %p531 = pneg %p104
        $region38: #{tpu_custom_call.1} parent=31 // pred_check_branch
          %533 = sbr.rel (%p531) target = $region40
        $region39: #{tpu_custom_call.1} parent=31 // pred_region
          %s535 = ssub.s32 256, 256
          %536 = vsyncadd %s527, %s535
          %s537 = smul.addr %s18, 2
          %s538 = smul.addr %s537, 128
          %s539 = scalar_lea.hbm %s3, %s538
          %s540 = sshll.u32 %s530, 4
          %s541 = int_to_ptr.vmem [resolvable:$true] %s540
          %546 = dma.vmem_to_hbm [thread:$0]  %s541, 256, %s539, %s527, 128, 128, 8
        $region40: #{tpu_custom_call.1} parent=31 // pred_fallthru
          _
      $region32: #{tpu_custom_call.1} parent=5 // pred_fallthru
        _
      %p547 = scmp.le.s32.totalorder 2, %s13
      // Predicated region
      $region41: #{tpu_custom_call.1} parent=5 // pred_check
        %p548 = pneg %p547
      $region42: #{tpu_custom_call.1} parent=5 // pred_check_branch
        %550 = sbr.rel (%p548) target = $region44
      $region43: #{tpu_custom_call.1} parent=5 // pred_region
        %s551 = ssub.s32 %s13, 2
        // Predicated region
        $region45: #{tpu_custom_call.1} parent=43 // pred_check
          %p552 = pneg %p110
        $region46: #{tpu_custom_call.1} parent=43 // pred_check_branch
          %554 = sbr.rel (%p552) target = $region48
        $region47: #{tpu_custom_call.1} parent=43 // pred_region
          %s555 = sand.u32 %s95, 1
          %s556 = scalar_lea.sflag [#allocation4], %s555
          %s557 = sand.u32 %s95, 1
          %s558 = smul.addr %s557, 16
          %s559 = scalar_lea.vmem [#allocation5], %s558
          %560 = dma.done %s556, 256
        $region48: #{tpu_custom_call.1} parent=43 // pred_fallthru
          _
      $region44: #{tpu_custom_call.1} parent=5 // pred_fallthru
        _
    $region6: #{tpu_custom_call.1} parent=1 // loop_footer
      %s17 = sadd.s32 1, %s13
    $region7: #{tpu_custom_call.1} parent=1 // loop_footer_branch
      %12 = sbr.rel target = $region3
    $region8: #{tpu_custom_call.1} parent=1 // loop_exit
      _
    %561 = vsyncpa [#allocation3], 1
    %s562 = scalar_lea.sflag [#allocation3], 1
    %563 = vsyncpa %s562, 1
    %564 = vsyncpa [#allocation4], 1
    %s565 = scalar_lea.sflag [#allocation4], 1
    %566 = vsyncpa %s565, 1

</llo_original>
